<compile_context>
chip_gen: v5e
topology: v5e:2x2
jax: 0.10.0
libtpu: 0.0.40
codegen_flags: <defaults>
</compile_context>

<pallas_src>
import jax
import jax.numpy as jnp
from jax.experimental import pallas as pl
from jax.experimental.pallas import tpu as pltpu


def _model2_head_kernel(feats_ref, w_ref, b_ref, o_ref):
    # feats_ref: (Bt, L, D)   w_ref: (D, Cp)   b_ref: (1, Cp)   o_ref: (Bt, Cp)
    inv_l = 1.0 / feats_ref.shape[1]                       # compile-time constant
    # Pooled mean as sum * (1/L): no extra full-tile f32 copy, constant multiply.
    pooled = jnp.sum(feats_ref[...], axis=1) * inv_l        # (Bt, D) f32
    # Single fused MXU matmul for both heads + bias, lane-dense 128-wide store.
    o_ref[...] = (
        jnp.dot(pooled, w_ref[...], preferred_element_type=jnp.float32)
        + b_ref[...]
    ).astype(o_ref.dtype)


def model2_head(feats, w1, b1, w2, b2, *, block_b=8):
    """feats: (B, L, D) float32; w*: (D, C); b*: (1, C) -> ((B, C), (B, C)).

    Fuses both linear heads into one lane-dense padded matmul and tiles the
    batch axis (parallel) so larger inference batches pipeline/shard cleanly.
    """
    B, L, D = feats.shape
    C = w1.shape[1]
    C2 = 2 * C
    # Pad the fused output width up to a multiple of 128 lanes (36+36=72 -> 128).
    Cp = max(128, pl.cdiv(C2, 128) * 128)

    # Fused, zero-padded weight/bias slabs: columns [0,C) -> head1, [C,2C) -> head2.
    w = jnp.zeros((D, Cp), jnp.float32)
    w = w.at[:, :C].set(w1.astype(jnp.float32))
    w = w.at[:, C:C2].set(w2.astype(jnp.float32))
    b = jnp.zeros((1, Cp), jnp.float32)
    b = b.at[:, :C].set(b1.reshape(1, C).astype(jnp.float32))
    b = b.at[:, C:C2].set(b2.reshape(1, C).astype(jnp.float32))

    # Tile the batch axis; pad B up to a multiple of the tile so every block
    # (incl. the output's (Bt, 128) block) satisfies the (8,128) layout rule.
    Bt = block_b
    B_pad = pl.cdiv(B, Bt) * Bt
    if B_pad != B:
        feats = jnp.pad(feats, ((0, B_pad - B), (0, 0), (0, 0)))

    out = pl.pallas_call(
        _model2_head_kernel,
        out_shape=jax.ShapeDtypeStruct((B_pad, Cp), jnp.float32),
        grid=(B_pad // Bt,),
        in_specs=[
            pl.BlockSpec((Bt, L, D), lambda i: (i, 0, 0)),   # feats tile over batch
            pl.BlockSpec((D, Cp), lambda i: (0, 0)),          # fused weights, resident
            pl.BlockSpec((1, Cp), lambda i: (0, 0)),          # fused bias, resident
        ],
        out_specs=pl.BlockSpec((Bt, Cp), lambda i: (i, 0)),
        compiler_params=pltpu.CompilerParams(
            dimension_semantics=("parallel",)),
    )(feats, w, b)

    out = out[:B]                       # drop batch padding
    return out[:, :C], out[:, C:C2]     # split fused lanes back into the two heads


if __name__ == "__main__":
    B, L, D, C = 2, 49, 768, 36  # swin_tiny forward_features: (B, 49, 768)

    key = jax.random.PRNGKey(0)
    k_feat, k_w1, k_b1, k_w2, k_b2 = jax.random.split(key, 5)

    # Stand-in for backbone features (output of self.layers.forward_features).
    feats = jax.random.normal(k_feat, (B, L, D), dtype=jnp.float32)

    # Deterministic Linear(768, 36) params, PyTorch-default-style uniform init.
    # Stored as (D, C) == W.T so the kernel computes pooled @ W.T + b.
    bound = 1.0 / (D ** 0.5)
    w1 = jax.random.uniform(k_w1, (D, C), jnp.float32, -bound, bound)
    b1 = jax.random.uniform(k_b1, (1, C), jnp.float32, -bound, bound)
    w2 = jax.random.uniform(k_w2, (D, C), jnp.float32, -bound, bound)
    b2 = jax.random.uniform(k_b2, (1, C), jnp.float32, -bound, bound)

    out1, out2 = model2_head(feats, w1, b1, w2, b2)
    jax.block_until_ready((out1, out2))

    # Cross-check against plain-JAX reference.
    pooled_ref = feats.mean(axis=1)
    ref1 = pooled_ref @ w1 + b1
    ref2 = pooled_ref @ w2 + b2
    assert out1.shape == (B, C) and out2.shape == (B, C)
    assert jnp.allclose(out1, ref1, atol=1e-4, rtol=1e-4)
    assert jnp.allclose(out2, ref2, atol=1e-4, rtol=1e-4)

    print("KERNEL_OK")
</pallas_src>

<mosaic_0001>
module attributes {stable_mosaic.version = 11 : i64} {
  func.func @_model2_head_kernel(%arg0: i32, %arg1: memref<8x49x768xf32, #tpu.memory_space<vmem>>, %arg2: memref<768x128xf32, #tpu.memory_space<vmem>>, %arg3: memref<1x128xf32, #tpu.memory_space<vmem>>, %arg4: memref<8x128xf32, #tpu.memory_space<vmem>>) attributes {dimension_semantics = [#tpu.dimension_semantics<parallel>], iteration_bounds = array<i64: 1>, scalar_prefetch = 0 : i64, scratch_operands = 0 : i64, tpu.core_type = #tpu.core_type<tc>, window_params = [{transform_indices = @transform_0, window_bounds = array<i64: 8, 49, 768>}, {pipeline_mode = #tpu.pipeline_mode<synchronous>, transform_indices = @transform_1, window_bounds = array<i64: 768, 128>}, {pipeline_mode = #tpu.pipeline_mode<synchronous>, transform_indices = @transform_2, window_bounds = array<i64: 1, 128>}, {transform_indices = @transform_3, window_bounds = array<i64: 8, 128>}]} {
    %c0 = arith.constant 0 : index
    %c0_0 = arith.constant 0 : index
    %c0_1 = arith.constant 0 : index
    %0 = vector.load %arg1[%c0, %c0_0, %c0_1] : memref<8x49x768xf32, #tpu.memory_space<vmem>>, vector<8x49x768xf32>
    %cst = arith.constant dense<0.000000e+00> : vector<8x768xf32>
    %1 = vector.multi_reduction <add>, %0, %cst [1] : vector<8x49x768xf32> to vector<8x768xf32>
    %cst_2 = arith.constant 0.0204081628 : f32
    %2 = vector.broadcast %cst_2 : f32 to vector<8x768xf32>
    %3 = arith.mulf %1, %2 : vector<8x768xf32>
    %c0_3 = arith.constant 0 : index
    %c0_4 = arith.constant 0 : index
    %4 = vector.load %arg2[%c0_3, %c0_4] : memref<768x128xf32, #tpu.memory_space<vmem>>, vector<768x128xf32>
    %cst_5 = arith.constant dense<0.000000e+00> : vector<8x128xf32>
    %5 = tpu.matmul %3, %4, %cst_5 {dimension_numbers = #tpu.dot_dimension_numbers<[1], [0], [0], [1], [0, 0, 1, 1], [], []>} : vector<8x768xf32>, vector<768x128xf32>, vector<8x128xf32> -> vector<8x128xf32>
    %c0_6 = arith.constant 0 : index
    %c0_7 = arith.constant 0 : index
    %6 = vector.load %arg3[%c0_6, %c0_7] : memref<1x128xf32, #tpu.memory_space<vmem>>, vector<1x128xf32>
    %7 = vector.broadcast %6 : vector<1x128xf32> to vector<8x128xf32>
    %8 = arith.addf %5, %7 : vector<8x128xf32>
    %c0_8 = arith.constant 0 : index
    %c0_9 = arith.constant 0 : index
    %9 = vector.load %arg4[%c0_8, %c0_9] : memref<8x128xf32, #tpu.memory_space<vmem>>, vector<8x128xf32>
    tpu.vector_store %arg4[%c0_8, %c0_9], %8 {strides = array<i32>} : memref<8x128xf32, #tpu.memory_space<vmem>>, vector<8x128xf32>,
    return
  }
  func.func @transform_0(%arg0: i32) -> (i32, i32, i32) {
    %c0_i32 = arith.constant 0 : i32
    %c0_i32_0 = arith.constant 0 : i32
    %c0_i32_1 = arith.constant 0 : i32
    return %arg0, %c0_i32, %c0_i32_0 : i32, i32, i32
  }
  func.func @transform_1(%arg0: i32) -> (i32, i32) {
    %c0_i32 = arith.constant 0 : i32
    %c0_i32_0 = arith.constant 0 : i32
    %c0_i32_1 = arith.constant 0 : i32
    return %c0_i32, %c0_i32_0 : i32, i32
  }
  func.func @transform_2(%arg0: i32) -> (i32, i32) {
    %c0_i32 = arith.constant 0 : i32
    %c0_i32_0 = arith.constant 0 : i32
    %c0_i32_1 = arith.constant 0 : i32
    return %c0_i32, %c0_i32_0 : i32, i32
  }
  func.func @transform_3(%arg0: i32) -> (i32, i32) {
    %c0_i32 = arith.constant 0 : i32
    %c0_i32_0 = arith.constant 0 : i32
    return %arg0, %c0_i32 : i32, i32
  }
}

</mosaic_0001>

<llo_original>
// kernel: tpu_custom_call.1
$region0: #{tpu_custom_call.1}
  #allocation0 [shape = 'u32[]', space=smem, size = 0x4, offset = 0x4, fixed_abs, tag = 'smem constant byte address 0x4 - core index']
  #allocation1 [shape = 'u32[72,128]{1,0:T(1,128)}', space=vmem, size = 0x9000, scoped, tag = 'internal scratch']
  %s0 = inlined_call_operand.vmem [shape: f32[8,49,768], index: 0, kind: input, shape index: {}]
  %s1 = inlined_call_operand.vmem [shape: f32[768,128], index: 1, kind: input, shape index: {}]
  %s2 = inlined_call_operand.vmem [shape: f32[1,128], index: 2, kind: input, shape index: {}]
  %s3 = inlined_call_operand.hbm [shape: f32[8,128], index: 3, kind: output, shape index: {}]
  %s4 = sld [smem:[#allocation0]]
  $region22: #{tpu_custom_call.1} parent=0
    _
  %s6 = ssub.s32 1, %s4
  %s7 = scalar_select 0, %s6, %s4
  $region1: #{tpu_custom_call.1} parent=0
    #allocation2 [shape = 'u8[4096]{0}', space=vmem, size = 0x1000, scoped, tag = 'output window, operand 0, single buffered']
    #allocation3 [shape = 's32[1]{0}', space=sflag, size = 0x4, scoped, tag = 'scoped memory for tpu_custom_call.1']
    %8 = vsyncpa [#allocation3], 0
    // Predicated region
    $region2: #{tpu_custom_call.1} parent=1 // pred_check
      _
    $region3: #{tpu_custom_call.1} parent=1 // pred_check_branch
      %10 = sbr.rel (0) target = $region5
    $region4: #{tpu_custom_call.1} parent=1 // pred_region
      _
    $region5: #{tpu_custom_call.1} parent=1 // pred_fallthru
      _
    // Predicated region
    $region6: #{tpu_custom_call.1} parent=1 // pred_check
      _
    $region7: #{tpu_custom_call.1} parent=1 // pred_check_branch
      %12 = sbr.rel (0) target = $region9
    $region8: #{tpu_custom_call.1} parent=1 // pred_region
      _
    $region9: #{tpu_custom_call.1} parent=1 // pred_fallthru
      _
    // Predicated region
    $region10: #{tpu_custom_call.1} parent=1 // pred_check
      _
    $region11: #{tpu_custom_call.1} parent=1 // pred_check_branch
      %14 = sbr.rel (0) target = $region13
    $region12: #{tpu_custom_call.1} parent=1 // pred_region
      _
    $region13: #{tpu_custom_call.1} parent=1 // pred_fallthru
      _
    %v15 = vld [vmem:[%s0] sm:$0xff]
    %v16 = vld [vmem:[%s0 + $0x8] sm:$0xff]
    %v17 = vld [vmem:[%s0 + $0x10] sm:$0xff]
    %v18 = vld [vmem:[%s0 + $0x18] sm:$0xff]
    %v19 = vld [vmem:[%s0 + $0x20] sm:$0xff]
    %v20 = vld [vmem:[%s0 + $0x28] sm:$0xff]
    %v21 = vld [vmem:[%s0 + $0x30] sm:$0xff]
    %v22 = vld [vmem:[%s0 + $0x38] sm:$0xff]
    %v23 = vld [vmem:[%s0 + $0x40] sm:$0xff]
    %v24 = vld [vmem:[%s0 + $0x48] sm:$0xff]
    %v25 = vld [vmem:[%s0 + $0x50] sm:$0xff]
    %v26 = vld [vmem:[%s0 + $0x58] sm:$0xff]
    %v27 = vld [vmem:[%s0 + $0x60] sm:$0xff]
    %v28 = vld [vmem:[%s0 + $0x68] sm:$0xff]
    %v29 = vld [vmem:[%s0 + $0x70] sm:$0xff]
    %v30 = vld [vmem:[%s0 + $0x78] sm:$0xff]
    %v31 = vld [vmem:[%s0 + $0x80] sm:$0xff]
    %v32 = vld [vmem:[%s0 + $0x88] sm:$0xff]
    %v33 = vld [vmem:[%s0 + $0x90] sm:$0xff]
    %v34 = vld [vmem:[%s0 + $0x98] sm:$0xff]
    %v35 = vld [vmem:[%s0 + $0xa0] sm:$0xff]
    %v36 = vld [vmem:[%s0 + $0xa8] sm:$0xff]
    %v37 = vld [vmem:[%s0 + $0xb0] sm:$0xff]
    %v38 = vld [vmem:[%s0 + $0xb8] sm:$0xff]
    %v39 = vld [vmem:[%s0 + $0xc0] sm:$0xff]
    %v40 = vld [vmem:[%s0 + $0xc8] sm:$0xff]
    %v41 = vld [vmem:[%s0 + $0xd0] sm:$0xff]
    %v42 = vld [vmem:[%s0 + $0xd8] sm:$0xff]
    %v43 = vld [vmem:[%s0 + $0xe0] sm:$0xff]
    %v44 = vld [vmem:[%s0 + $0xe8] sm:$0xff]
    %v45 = vld [vmem:[%s0 + $0xf0] sm:$0xff]
    %v46 = vld [vmem:[%s0 + $0xf8] sm:$0xff]
    %v47 = vld [vmem:[%s0 + $0x100] sm:$0xff]
    %v48 = vld [vmem:[%s0 + $0x108] sm:$0xff]
    %v49 = vld [vmem:[%s0 + $0x110] sm:$0xff]
    %v50 = vld [vmem:[%s0 + $0x118] sm:$0xff]
    %v51 = vld [vmem:[%s0 + $0x120] sm:$0x1]
    %v52 = vld [vmem:[%s0 + $0x128] sm:$0x1]
    %v53 = vld [vmem:[%s0 + $0x130] sm:$0x1]
    %v54 = vld [vmem:[%s0 + $0x138] sm:$0x1]
    %v55 = vld [vmem:[%s0 + $0x140] sm:$0x1]
    %v56 = vld [vmem:[%s0 + $0x148] sm:$0x1]
    %v57 = vld [vmem:[%s0 + $0x150] sm:$0xff]
    %v58 = vld [vmem:[%s0 + $0x158] sm:$0xff]
    %v59 = vld [vmem:[%s0 + $0x160] sm:$0xff]
    %v60 = vld [vmem:[%s0 + $0x168] sm:$0xff]
    %v61 = vld [vmem:[%s0 + $0x170] sm:$0xff]
    %v62 = vld [vmem:[%s0 + $0x178] sm:$0xff]
    %v63 = vld [vmem:[%s0 + $0x180] sm:$0xff]
    %v64 = vld [vmem:[%s0 + $0x188] sm:$0xff]
    %v65 = vld [vmem:[%s0 + $0x190] sm:$0xff]
    %v66 = vld [vmem:[%s0 + $0x198] sm:$0xff]
    %v67 = vld [vmem:[%s0 + $0x1a0] sm:$0xff]
    %v68 = vld [vmem:[%s0 + $0x1a8] sm:$0xff]
    %v69 = vld [vmem:[%s0 + $0x1b0] sm:$0xff]
    %v70 = vld [vmem:[%s0 + $0x1b8] sm:$0xff]
    %v71 = vld [vmem:[%s0 + $0x1c0] sm:$0xff]
    %v72 = vld [vmem:[%s0 + $0x1c8] sm:$0xff]
    %v73 = vld [vmem:[%s0 + $0x1d0] sm:$0xff]
    %v74 = vld [vmem:[%s0 + $0x1d8] sm:$0xff]
    %v75 = vld [vmem:[%s0 + $0x1e0] sm:$0xff]
    %v76 = vld [vmem:[%s0 + $0x1e8] sm:$0xff]
    %v77 = vld [vmem:[%s0 + $0x1f0] sm:$0xff]
    %v78 = vld [vmem:[%s0 + $0x1f8] sm:$0xff]
    %v79 = vld [vmem:[%s0 + $0x200] sm:$0xff]
    %v80 = vld [vmem:[%s0 + $0x208] sm:$0xff]
    %v81 = vld [vmem:[%s0 + $0x210] sm:$0xff]
    %v82 = vld [vmem:[%s0 + $0x218] sm:$0xff]
    %v83 = vld [vmem:[%s0 + $0x220] sm:$0xff]
    %v84 = vld [vmem:[%s0 + $0x228] sm:$0xff]
    %v85 = vld [vmem:[%s0 + $0x230] sm:$0xff]
    %v86 = vld [vmem:[%s0 + $0x238] sm:$0xff]
    %v87 = vld [vmem:[%s0 + $0x240] sm:$0xff]
    %v88 = vld [vmem:[%s0 + $0x248] sm:$0xff]
    %v89 = vld [vmem:[%s0 + $0x250] sm:$0xff]
    %v90 = vld [vmem:[%s0 + $0x258] sm:$0xff]
    %v91 = vld [vmem:[%s0 + $0x260] sm:$0xff]
    %v92 = vld [vmem:[%s0 + $0x268] sm:$0xff]
    %v93 = vld [vmem:[%s0 + $0x270] sm:$0x1]
    %v94 = vld [vmem:[%s0 + $0x278] sm:$0x1]
    %v95 = vld [vmem:[%s0 + $0x280] sm:$0x1]
    %v96 = vld [vmem:[%s0 + $0x288] sm:$0x1]
    %v97 = vld [vmem:[%s0 + $0x290] sm:$0x1]
    %v98 = vld [vmem:[%s0 + $0x298] sm:$0x1]
    %v99 = vld [vmem:[%s0 + $0x2a0] sm:$0xff]
    %v100 = vld [vmem:[%s0 + $0x2a8] sm:$0xff]
    %v101 = vld [vmem:[%s0 + $0x2b0] sm:$0xff]
    %v102 = vld [vmem:[%s0 + $0x2b8] sm:$0xff]
    %v103 = vld [vmem:[%s0 + $0x2c0] sm:$0xff]
    %v104 = vld [vmem:[%s0 + $0x2c8] sm:$0xff]
    %v105 = vld [vmem:[%s0 + $0x2d0] sm:$0xff]
    %v106 = vld [vmem:[%s0 + $0x2d8] sm:$0xff]
    %v107 = vld [vmem:[%s0 + $0x2e0] sm:$0xff]
    %v108 = vld [vmem:[%s0 + $0x2e8] sm:$0xff]
    %v109 = vld [vmem:[%s0 + $0x2f0] sm:$0xff]
    %v110 = vld [vmem:[%s0 + $0x2f8] sm:$0xff]
    %v111 = vld [vmem:[%s0 + $0x300] sm:$0xff]
    %v112 = vld [vmem:[%s0 + $0x308] sm:$0xff]
    %v113 = vld [vmem:[%s0 + $0x310] sm:$0xff]
    %v114 = vld [vmem:[%s0 + $0x318] sm:$0xff]
    %v115 = vld [vmem:[%s0 + $0x320] sm:$0xff]
    %v116 = vld [vmem:[%s0 + $0x328] sm:$0xff]
    %v117 = vld [vmem:[%s0 + $0x330] sm:$0xff]
    %v118 = vld [vmem:[%s0 + $0x338] sm:$0xff]
    %v119 = vld [vmem:[%s0 + $0x340] sm:$0xff]
    %v120 = vld [vmem:[%s0 + $0x348] sm:$0xff]
    %v121 = vld [vmem:[%s0 + $0x350] sm:$0xff]
    %v122 = vld [vmem:[%s0 + $0x358] sm:$0xff]
    %v123 = vld [vmem:[%s0 + $0x360] sm:$0xff]
    %v124 = vld [vmem:[%s0 + $0x368] sm:$0xff]
    %v125 = vld [vmem:[%s0 + $0x370] sm:$0xff]
    %v126 = vld [vmem:[%s0 + $0x378] sm:$0xff]
    %v127 = vld [vmem:[%s0 + $0x380] sm:$0xff]
    %v128 = vld [vmem:[%s0 + $0x388] sm:$0xff]
    %v129 = vld [vmem:[%s0 + $0x390] sm:$0xff]
    %v130 = vld [vmem:[%s0 + $0x398] sm:$0xff]
    %v131 = vld [vmem:[%s0 + $0x3a0] sm:$0xff]
    %v132 = vld [vmem:[%s0 + $0x3a8] sm:$0xff]
    %v133 = vld [vmem:[%s0 + $0x3b0] sm:$0xff]
    %v134 = vld [vmem:[%s0 + $0x3b8] sm:$0xff]
    %v135 = vld [vmem:[%s0 + $0x3c0] sm:$0x1]
    %v136 = vld [vmem:[%s0 + $0x3c8] sm:$0x1]
    %v137 = vld [vmem:[%s0 + $0x3d0] sm:$0x1]
    %v138 = vld [vmem:[%s0 + $0x3d8] sm:$0x1]
    %v139 = vld [vmem:[%s0 + $0x3e0] sm:$0x1]
    %v140 = vld [vmem:[%s0 + $0x3e8] sm:$0x1]
    %v141 = vld [vmem:[%s0 + $0x3f0] sm:$0xff]
    %v142 = vld [vmem:[%s0 + $0x3f8] sm:$0xff]
    %v143 = vld [vmem:[%s0 + $0x400] sm:$0xff]
    %v144 = vld [vmem:[%s0 + $0x408] sm:$0xff]
    %v145 = vld [vmem:[%s0 + $0x410] sm:$0xff]
    %v146 = vld [vmem:[%s0 + $0x418] sm:$0xff]
    %v147 = vld [vmem:[%s0 + $0x420] sm:$0xff]
    %v148 = vld [vmem:[%s0 + $0x428] sm:$0xff]
    %v149 = vld [vmem:[%s0 + $0x430] sm:$0xff]
    %v150 = vld [vmem:[%s0 + $0x438] sm:$0xff]
    %v151 = vld [vmem:[%s0 + $0x440] sm:$0xff]
    %v152 = vld [vmem:[%s0 + $0x448] sm:$0xff]
    %v153 = vld [vmem:[%s0 + $0x450] sm:$0xff]
    %v154 = vld [vmem:[%s0 + $0x458] sm:$0xff]
    %v155 = vld [vmem:[%s0 + $0x460] sm:$0xff]
    %v156 = vld [vmem:[%s0 + $0x468] sm:$0xff]
    %v157 = vld [vmem:[%s0 + $0x470] sm:$0xff]
    %v158 = vld [vmem:[%s0 + $0x478] sm:$0xff]
    %v159 = vld [vmem:[%s0 + $0x480] sm:$0xff]
    %v160 = vld [vmem:[%s0 + $0x488] sm:$0xff]
    %v161 = vld [vmem:[%s0 + $0x490] sm:$0xff]
    %v162 = vld [vmem:[%s0 + $0x498] sm:$0xff]
    %v163 = vld [vmem:[%s0 + $0x4a0] sm:$0xff]
    %v164 = vld [vmem:[%s0 + $0x4a8] sm:$0xff]
    %v165 = vld [vmem:[%s0 + $0x4b0] sm:$0xff]
    %v166 = vld [vmem:[%s0 + $0x4b8] sm:$0xff]
    %v167 = vld [vmem:[%s0 + $0x4c0] sm:$0xff]
    %v168 = vld [vmem:[%s0 + $0x4c8] sm:$0xff]
    %v169 = vld [vmem:[%s0 + $0x4d0] sm:$0xff]
    %v170 = vld [vmem:[%s0 + $0x4d8] sm:$0xff]
    %v171 = vld [vmem:[%s0 + $0x4e0] sm:$0xff]
    %v172 = vld [vmem:[%s0 + $0x4e8] sm:$0xff]
    %v173 = vld [vmem:[%s0 + $0x4f0] sm:$0xff]
    %v174 = vld [vmem:[%s0 + $0x4f8] sm:$0xff]
    %v175 = vld [vmem:[%s0 + $0x500] sm:$0xff]
    %v176 = vld [vmem:[%s0 + $0x508] sm:$0xff]
    %v177 = vld [vmem:[%s0 + $0x510] sm:$0x1]
    %v178 = vld [vmem:[%s0 + $0x518] sm:$0x1]
    %v179 = vld [vmem:[%s0 + $0x520] sm:$0x1]
    %v180 = vld [vmem:[%s0 + $0x528] sm:$0x1]
    %v181 = vld [vmem:[%s0 + $0x530] sm:$0x1]
    %v182 = vld [vmem:[%s0 + $0x538] sm:$0x1]
    %v183 = vld [vmem:[%s0 + $0x540] sm:$0xff]
    %v184 = vld [vmem:[%s0 + $0x548] sm:$0xff]
    %v185 = vld [vmem:[%s0 + $0x550] sm:$0xff]
    %v186 = vld [vmem:[%s0 + $0x558] sm:$0xff]
    %v187 = vld [vmem:[%s0 + $0x560] sm:$0xff]
    %v188 = vld [vmem:[%s0 + $0x568] sm:$0xff]
    %v189 = vld [vmem:[%s0 + $0x570] sm:$0xff]
    %v190 = vld [vmem:[%s0 + $0x578] sm:$0xff]
    %v191 = vld [vmem:[%s0 + $0x580] sm:$0xff]
    %v192 = vld [vmem:[%s0 + $0x588] sm:$0xff]
    %v193 = vld [vmem:[%s0 + $0x590] sm:$0xff]
    %v194 = vld [vmem:[%s0 + $0x598] sm:$0xff]
    %v195 = vld [vmem:[%s0 + $0x5a0] sm:$0xff]
    %v196 = vld [vmem:[%s0 + $0x5a8] sm:$0xff]
    %v197 = vld [vmem:[%s0 + $0x5b0] sm:$0xff]
    %v198 = vld [vmem:[%s0 + $0x5b8] sm:$0xff]
    %v199 = vld [vmem:[%s0 + $0x5c0] sm:$0xff]
    %v200 = vld [vmem:[%s0 + $0x5c8] sm:$0xff]
    %v201 = vld [vmem:[%s0 + $0x5d0] sm:$0xff]
    %v202 = vld [vmem:[%s0 + $0x5d8] sm:$0xff]
    %v203 = vld [vmem:[%s0 + $0x5e0] sm:$0xff]
    %v204 = vld [vmem:[%s0 + $0x5e8] sm:$0xff]
    %v205 = vld [vmem:[%s0 + $0x5f0] sm:$0xff]
    %v206 = vld [vmem:[%s0 + $0x5f8] sm:$0xff]
    %v207 = vld [vmem:[%s0 + $0x600] sm:$0xff]
    %v208 = vld [vmem:[%s0 + $0x608] sm:$0xff]
    %v209 = vld [vmem:[%s0 + $0x610] sm:$0xff]
    %v210 = vld [vmem:[%s0 + $0x618] sm:$0xff]
    %v211 = vld [vmem:[%s0 + $0x620] sm:$0xff]
    %v212 = vld [vmem:[%s0 + $0x628] sm:$0xff]
    %v213 = vld [vmem:[%s0 + $0x630] sm:$0xff]
    %v214 = vld [vmem:[%s0 + $0x638] sm:$0xff]
    %v215 = vld [vmem:[%s0 + $0x640] sm:$0xff]
    %v216 = vld [vmem:[%s0 + $0x648] sm:$0xff]
    %v217 = vld [vmem:[%s0 + $0x650] sm:$0xff]
    %v218 = vld [vmem:[%s0 + $0x658] sm:$0xff]
    %v219 = vld [vmem:[%s0 + $0x660] sm:$0x1]
    %v220 = vld [vmem:[%s0 + $0x668] sm:$0x1]
    %v221 = vld [vmem:[%s0 + $0x670] sm:$0x1]
    %v222 = vld [vmem:[%s0 + $0x678] sm:$0x1]
    %v223 = vld [vmem:[%s0 + $0x680] sm:$0x1]
    %v224 = vld [vmem:[%s0 + $0x688] sm:$0x1]
    %v225 = vld [vmem:[%s0 + $0x690] sm:$0xff]
    %v226 = vld [vmem:[%s0 + $0x698] sm:$0xff]
    %v227 = vld [vmem:[%s0 + $0x6a0] sm:$0xff]
    %v228 = vld [vmem:[%s0 + $0x6a8] sm:$0xff]
    %v229 = vld [vmem:[%s0 + $0x6b0] sm:$0xff]
    %v230 = vld [vmem:[%s0 + $0x6b8] sm:$0xff]
    %v231 = vld [vmem:[%s0 + $0x6c0] sm:$0xff]
    %v232 = vld [vmem:[%s0 + $0x6c8] sm:$0xff]
    %v233 = vld [vmem:[%s0 + $0x6d0] sm:$0xff]
    %v234 = vld [vmem:[%s0 + $0x6d8] sm:$0xff]
    %v235 = vld [vmem:[%s0 + $0x6e0] sm:$0xff]
    %v236 = vld [vmem:[%s0 + $0x6e8] sm:$0xff]
    %v237 = vld [vmem:[%s0 + $0x6f0] sm:$0xff]
    %v238 = vld [vmem:[%s0 + $0x6f8] sm:$0xff]
    %v239 = vld [vmem:[%s0 + $0x700] sm:$0xff]
    %v240 = vld [vmem:[%s0 + $0x708] sm:$0xff]
    %v241 = vld [vmem:[%s0 + $0x710] sm:$0xff]
    %v242 = vld [vmem:[%s0 + $0x718] sm:$0xff]
    %v243 = vld [vmem:[%s0 + $0x720] sm:$0xff]
    %v244 = vld [vmem:[%s0 + $0x728] sm:$0xff]
    %v245 = vld [vmem:[%s0 + $0x730] sm:$0xff]
    %v246 = vld [vmem:[%s0 + $0x738] sm:$0xff]
    %v247 = vld [vmem:[%s0 + $0x740] sm:$0xff]
    %v248 = vld [vmem:[%s0 + $0x748] sm:$0xff]
    %v249 = vld [vmem:[%s0 + $0x750] sm:$0xff]
    %v250 = vld [vmem:[%s0 + $0x758] sm:$0xff]
    %v251 = vld [vmem:[%s0 + $0x760] sm:$0xff]
    %v252 = vld [vmem:[%s0 + $0x768] sm:$0xff]
    %v253 = vld [vmem:[%s0 + $0x770] sm:$0xff]
    %v254 = vld [vmem:[%s0 + $0x778] sm:$0xff]
    %v255 = vld [vmem:[%s0 + $0x780] sm:$0xff]
    %v256 = vld [vmem:[%s0 + $0x788] sm:$0xff]
    %v257 = vld [vmem:[%s0 + $0x790] sm:$0xff]
    %v258 = vld [vmem:[%s0 + $0x798] sm:$0xff]
    %v259 = vld [vmem:[%s0 + $0x7a0] sm:$0xff]
    %v260 = vld [vmem:[%s0 + $0x7a8] sm:$0xff]
    %v261 = vld [vmem:[%s0 + $0x7b0] sm:$0x1]
    %v262 = vld [vmem:[%s0 + $0x7b8] sm:$0x1]
    %v263 = vld [vmem:[%s0 + $0x7c0] sm:$0x1]
    %v264 = vld [vmem:[%s0 + $0x7c8] sm:$0x1]
    %v265 = vld [vmem:[%s0 + $0x7d0] sm:$0x1]
    %v266 = vld [vmem:[%s0 + $0x7d8] sm:$0x1]
    %v267 = vld [vmem:[%s0 + $0x7e0] sm:$0xff]
    %v268 = vld [vmem:[%s0 + $0x7e8] sm:$0xff]
    %v269 = vld [vmem:[%s0 + $0x7f0] sm:$0xff]
    %v270 = vld [vmem:[%s0 + $0x7f8] sm:$0xff]
    %v271 = vld [vmem:[%s0 + $0x800] sm:$0xff]
    %v272 = vld [vmem:[%s0 + $0x808] sm:$0xff]
    %v273 = vld [vmem:[%s0 + $0x810] sm:$0xff]
    %v274 = vld [vmem:[%s0 + $0x818] sm:$0xff]
    %v275 = vld [vmem:[%s0 + $0x820] sm:$0xff]
    %v276 = vld [vmem:[%s0 + $0x828] sm:$0xff]
    %v277 = vld [vmem:[%s0 + $0x830] sm:$0xff]
    %v278 = vld [vmem:[%s0 + $0x838] sm:$0xff]
    %v279 = vld [vmem:[%s0 + $0x840] sm:$0xff]
    %v280 = vld [vmem:[%s0 + $0x848] sm:$0xff]
    %v281 = vld [vmem:[%s0 + $0x850] sm:$0xff]
    %v282 = vld [vmem:[%s0 + $0x858] sm:$0xff]
    %v283 = vld [vmem:[%s0 + $0x860] sm:$0xff]
    %v284 = vld [vmem:[%s0 + $0x868] sm:$0xff]
    %v285 = vld [vmem:[%s0 + $0x870] sm:$0xff]
    %v286 = vld [vmem:[%s0 + $0x878] sm:$0xff]
    %v287 = vld [vmem:[%s0 + $0x880] sm:$0xff]
    %v288 = vld [vmem:[%s0 + $0x888] sm:$0xff]
    %v289 = vld [vmem:[%s0 + $0x890] sm:$0xff]
    %v290 = vld [vmem:[%s0 + $0x898] sm:$0xff]
    %v291 = vld [vmem:[%s0 + $0x8a0] sm:$0xff]
    %v292 = vld [vmem:[%s0 + $0x8a8] sm:$0xff]
    %v293 = vld [vmem:[%s0 + $0x8b0] sm:$0xff]
    %v294 = vld [vmem:[%s0 + $0x8b8] sm:$0xff]
    %v295 = vld [vmem:[%s0 + $0x8c0] sm:$0xff]
    %v296 = vld [vmem:[%s0 + $0x8c8] sm:$0xff]
    %v297 = vld [vmem:[%s0 + $0x8d0] sm:$0xff]
    %v298 = vld [vmem:[%s0 + $0x8d8] sm:$0xff]
    %v299 = vld [vmem:[%s0 + $0x8e0] sm:$0xff]
    %v300 = vld [vmem:[%s0 + $0x8e8] sm:$0xff]
    %v301 = vld [vmem:[%s0 + $0x8f0] sm:$0xff]
    %v302 = vld [vmem:[%s0 + $0x8f8] sm:$0xff]
    %v303 = vld [vmem:[%s0 + $0x900] sm:$0x1]
    %v304 = vld [vmem:[%s0 + $0x908] sm:$0x1]
    %v305 = vld [vmem:[%s0 + $0x910] sm:$0x1]
    %v306 = vld [vmem:[%s0 + $0x918] sm:$0x1]
    %v307 = vld [vmem:[%s0 + $0x920] sm:$0x1]
    %v308 = vld [vmem:[%s0 + $0x928] sm:$0x1]
    %v309 = vld [vmem:[%s0 + $0x930] sm:$0xff]
    %v310 = vld [vmem:[%s0 + $0x938] sm:$0xff]
    %v311 = vld [vmem:[%s0 + $0x940] sm:$0xff]
    %v312 = vld [vmem:[%s0 + $0x948] sm:$0xff]
    %v313 = vld [vmem:[%s0 + $0x950] sm:$0xff]
    %v314 = vld [vmem:[%s0 + $0x958] sm:$0xff]
    %v315 = vld [vmem:[%s0 + $0x960] sm:$0xff]
    %v316 = vld [vmem:[%s0 + $0x968] sm:$0xff]
    %v317 = vld [vmem:[%s0 + $0x970] sm:$0xff]
    %v318 = vld [vmem:[%s0 + $0x978] sm:$0xff]
    %v319 = vld [vmem:[%s0 + $0x980] sm:$0xff]
    %v320 = vld [vmem:[%s0 + $0x988] sm:$0xff]
    %v321 = vld [vmem:[%s0 + $0x990] sm:$0xff]
    %v322 = vld [vmem:[%s0 + $0x998] sm:$0xff]
    %v323 = vld [vmem:[%s0 + $0x9a0] sm:$0xff]
    %v324 = vld [vmem:[%s0 + $0x9a8] sm:$0xff]
    %v325 = vld [vmem:[%s0 + $0x9b0] sm:$0xff]
    %v326 = vld [vmem:[%s0 + $0x9b8] sm:$0xff]
    %v327 = vld [vmem:[%s0 + $0x9c0] sm:$0xff]
    %v328 = vld [vmem:[%s0 + $0x9c8] sm:$0xff]
    %v329 = vld [vmem:[%s0 + $0x9d0] sm:$0xff]
    %v330 = vld [vmem:[%s0 + $0x9d8] sm:$0xff]
    %v331 = vld [vmem:[%s0 + $0x9e0] sm:$0xff]
    %v332 = vld [vmem:[%s0 + $0x9e8] sm:$0xff]
    %v333 = vld [vmem:[%s0 + $0x9f0] sm:$0xff]
    %v334 = vld [vmem:[%s0 + $0x9f8] sm:$0xff]
    %v335 = vld [vmem:[%s0 + $0xa00] sm:$0xff]
    %v336 = vld [vmem:[%s0 + $0xa08] sm:$0xff]
    %v337 = vld [vmem:[%s0 + $0xa10] sm:$0xff]
    %v338 = vld [vmem:[%s0 + $0xa18] sm:$0xff]
    %v339 = vld [vmem:[%s0 + $0xa20] sm:$0xff]
    %v340 = vld [vmem:[%s0 + $0xa28] sm:$0xff]
    %v341 = vld [vmem:[%s0 + $0xa30] sm:$0xff]
    %v342 = vld [vmem:[%s0 + $0xa38] sm:$0xff]
    %v343 = vld [vmem:[%s0 + $0xa40] sm:$0xff]
    %v344 = vld [vmem:[%s0 + $0xa48] sm:$0xff]
    %v345 = vld [vmem:[%s0 + $0xa50] sm:$0x1]
    %v346 = vld [vmem:[%s0 + $0xa58] sm:$0x1]
    %v347 = vld [vmem:[%s0 + $0xa60] sm:$0x1]
    %v348 = vld [vmem:[%s0 + $0xa68] sm:$0x1]
    %v349 = vld [vmem:[%s0 + $0xa70] sm:$0x1]
    %v350 = vld [vmem:[%s0 + $0xa78] sm:$0x1]
    %v351 = vadd.f32 %v15, %v21
    %v352 = vadd.f32 %v351, %v27
    %v353 = vadd.f32 %v352, %v33
    %v354 = vadd.f32 %v353, %v39
    %v355 = vadd.f32 %v354, %v45
    %vm356 = vcmask 1040384
    %v357 = vsel %vm356, %v51, 0.0
    %v358 = vadd.f32 %v355, %v357
    %v359 = vrot.slane %v358, 4
    %v360 = vadd.f32 %v358, %v359
    %v361 = vrot.slane %v360, 2
    %v362 = vadd.f32 %v360, %v361
    %v363 = vrot.slane %v362, 1
    %v364 = vadd.f32 %v362, %v363
    %v365 = vadd.f32 %v16, %v22
    %v366 = vadd.f32 %v365, %v28
    %v367 = vadd.f32 %v366, %v34
    %v368 = vadd.f32 %v367, %v40
    %v369 = vadd.f32 %v368, %v46
    %v370 = vsel %vm356, %v52, 0.0
    %v371 = vadd.f32 %v369, %v370
    %v372 = vrot.slane %v371, 4
    %v373 = vadd.f32 %v371, %v372
    %v374 = vrot.slane %v373, 2
    %v375 = vadd.f32 %v373, %v374
    %v376 = vrot.slane %v375, 1
    %v377 = vadd.f32 %v375, %v376
    %v378 = vadd.f32 %v17, %v23
    %v379 = vadd.f32 %v378, %v29
    %v380 = vadd.f32 %v379, %v35
    %v381 = vadd.f32 %v380, %v41
    %v382 = vadd.f32 %v381, %v47
    %v383 = vsel %vm356, %v53, 0.0
    %v384 = vadd.f32 %v382, %v383
    %v385 = vrot.slane %v384, 4
    %v386 = vadd.f32 %v384, %v385
    %v387 = vrot.slane %v386, 2
    %v388 = vadd.f32 %v386, %v387
    %v389 = vrot.slane %v388, 1
    %v390 = vadd.f32 %v388, %v389
    %v391 = vadd.f32 %v18, %v24
    %v392 = vadd.f32 %v391, %v30
    %v393 = vadd.f32 %v392, %v36
    %v394 = vadd.f32 %v393, %v42
    %v395 = vadd.f32 %v394, %v48
    %v396 = vsel %vm356, %v54, 0.0
    %v397 = vadd.f32 %v395, %v396
    %v398 = vrot.slane %v397, 4
    %v399 = vadd.f32 %v397, %v398
    %v400 = vrot.slane %v399, 2
    %v401 = vadd.f32 %v399, %v400
    %v402 = vrot.slane %v401, 1
    %v403 = vadd.f32 %v401, %v402
    %v404 = vadd.f32 %v19, %v25
    %v405 = vadd.f32 %v404, %v31
    %v406 = vadd.f32 %v405, %v37
    %v407 = vadd.f32 %v406, %v43
    %v408 = vadd.f32 %v407, %v49
    %v409 = vsel %vm356, %v55, 0.0
    %v410 = vadd.f32 %v408, %v409
    %v411 = vrot.slane %v410, 4
    %v412 = vadd.f32 %v410, %v411
    %v413 = vrot.slane %v412, 2
    %v414 = vadd.f32 %v412, %v413
    %v415 = vrot.slane %v414, 1
    %v416 = vadd.f32 %v414, %v415
    %v417 = vadd.f32 %v20, %v26
    %v418 = vadd.f32 %v417, %v32
    %v419 = vadd.f32 %v418, %v38
    %v420 = vadd.f32 %v419, %v44
    %v421 = vadd.f32 %v420, %v50
    %v422 = vsel %vm356, %v56, 0.0
    %v423 = vadd.f32 %v421, %v422
    %v424 = vrot.slane %v423, 4
    %v425 = vadd.f32 %v423, %v424
    %v426 = vrot.slane %v425, 2
    %v427 = vadd.f32 %v425, %v426
    %v428 = vrot.slane %v427, 1
    %v429 = vadd.f32 %v427, %v428
    %v430 = vadd.f32 %v57, %v63
    %v431 = vadd.f32 %v430, %v69
    %v432 = vadd.f32 %v431, %v75
    %v433 = vadd.f32 %v432, %v81
    %v434 = vadd.f32 %v433, %v87
    %v435 = vsel %vm356, %v93, 0.0
    %v436 = vadd.f32 %v434, %v435
    %v437 = vrot.slane %v436, 4
    %v438 = vadd.f32 %v436, %v437
    %v439 = vrot.slane %v438, 2
    %v440 = vadd.f32 %v438, %v439
    %v441 = vrot.slane %v440, 1
    %v442 = vadd.f32 %v440, %v441
    %v443 = vadd.f32 %v58, %v64
    %v444 = vadd.f32 %v443, %v70
    %v445 = vadd.f32 %v444, %v76
    %v446 = vadd.f32 %v445, %v82
    %v447 = vadd.f32 %v446, %v88
    %v448 = vsel %vm356, %v94, 0.0
    %v449 = vadd.f32 %v447, %v448
    %v450 = vrot.slane %v449, 4
    %v451 = vadd.f32 %v449, %v450
    %v452 = vrot.slane %v451, 2
    %v453 = vadd.f32 %v451, %v452
    %v454 = vrot.slane %v453, 1
    %v455 = vadd.f32 %v453, %v454
    %v456 = vadd.f32 %v59, %v65
    %v457 = vadd.f32 %v456, %v71
    %v458 = vadd.f32 %v457, %v77
    %v459 = vadd.f32 %v458, %v83
    %v460 = vadd.f32 %v459, %v89
    %v461 = vsel %vm356, %v95, 0.0
    %v462 = vadd.f32 %v460, %v461
    %v463 = vrot.slane %v462, 4
    %v464 = vadd.f32 %v462, %v463
    %v465 = vrot.slane %v464, 2
    %v466 = vadd.f32 %v464, %v465
    %v467 = vrot.slane %v466, 1
    %v468 = vadd.f32 %v466, %v467
    %v469 = vadd.f32 %v60, %v66
    %v470 = vadd.f32 %v469, %v72
    %v471 = vadd.f32 %v470, %v78
    %v472 = vadd.f32 %v471, %v84
    %v473 = vadd.f32 %v472, %v90
    %v474 = vsel %vm356, %v96, 0.0
    %v475 = vadd.f32 %v473, %v474
    %v476 = vrot.slane %v475, 4
    %v477 = vadd.f32 %v475, %v476
    %v478 = vrot.slane %v477, 2
    %v479 = vadd.f32 %v477, %v478
    %v480 = vrot.slane %v479, 1
    %v481 = vadd.f32 %v479, %v480
    %v482 = vadd.f32 %v61, %v67
    %v483 = vadd.f32 %v482, %v73
    %v484 = vadd.f32 %v483, %v79
    %v485 = vadd.f32 %v484, %v85
    %v486 = vadd.f32 %v485, %v91
    %v487 = vsel %vm356, %v97, 0.0
    %v488 = vadd.f32 %v486, %v487
    %v489 = vrot.slane %v488, 4
    %v490 = vadd.f32 %v488, %v489
    %v491 = vrot.slane %v490, 2
    %v492 = vadd.f32 %v490, %v491
    %v493 = vrot.slane %v492, 1
    %v494 = vadd.f32 %v492, %v493
    %v495 = vadd.f32 %v62, %v68
    %v496 = vadd.f32 %v495, %v74
    %v497 = vadd.f32 %v496, %v80
    %v498 = vadd.f32 %v497, %v86
    %v499 = vadd.f32 %v498, %v92
    %v500 = vsel %vm356, %v98, 0.0
    %v501 = vadd.f32 %v499, %v500
    %v502 = vrot.slane %v501, 4
    %v503 = vadd.f32 %v501, %v502
    %v504 = vrot.slane %v503, 2
    %v505 = vadd.f32 %v503, %v504
    %v506 = vrot.slane %v505, 1
    %v507 = vadd.f32 %v505, %v506
    %v508 = vadd.f32 %v99, %v105
    %v509 = vadd.f32 %v508, %v111
    %v510 = vadd.f32 %v509, %v117
    %v511 = vadd.f32 %v510, %v123
    %v512 = vadd.f32 %v511, %v129
    %v513 = vsel %vm356, %v135, 0.0
    %v514 = vadd.f32 %v512, %v513
    %v515 = vrot.slane %v514, 4
    %v516 = vadd.f32 %v514, %v515
    %v517 = vrot.slane %v516, 2
    %v518 = vadd.f32 %v516, %v517
    %v519 = vrot.slane %v518, 1
    %v520 = vadd.f32 %v518, %v519
    %v521 = vadd.f32 %v100, %v106
    %v522 = vadd.f32 %v521, %v112
    %v523 = vadd.f32 %v522, %v118
    %v524 = vadd.f32 %v523, %v124
    %v525 = vadd.f32 %v524, %v130
    %v526 = vsel %vm356, %v136, 0.0
    %v527 = vadd.f32 %v525, %v526
    %v528 = vrot.slane %v527, 4
    %v529 = vadd.f32 %v527, %v528
    %v530 = vrot.slane %v529, 2
    %v531 = vadd.f32 %v529, %v530
    %v532 = vrot.slane %v531, 1
    %v533 = vadd.f32 %v531, %v532
    %v534 = vadd.f32 %v101, %v107
    %v535 = vadd.f32 %v534, %v113
    %v536 = vadd.f32 %v535, %v119
    %v537 = vadd.f32 %v536, %v125
    %v538 = vadd.f32 %v537, %v131
    %v539 = vsel %vm356, %v137, 0.0
    %v540 = vadd.f32 %v538, %v539
    %v541 = vrot.slane %v540, 4
    %v542 = vadd.f32 %v540, %v541
    %v543 = vrot.slane %v542, 2
    %v544 = vadd.f32 %v542, %v543
    %v545 = vrot.slane %v544, 1
    %v546 = vadd.f32 %v544, %v545
    %v547 = vadd.f32 %v102, %v108
    %v548 = vadd.f32 %v547, %v114
    %v549 = vadd.f32 %v548, %v120
    %v550 = vadd.f32 %v549, %v126
    %v551 = vadd.f32 %v550, %v132
    %v552 = vsel %vm356, %v138, 0.0
    %v553 = vadd.f32 %v551, %v552
    %v554 = vrot.slane %v553, 4
    %v555 = vadd.f32 %v553, %v554
    %v556 = vrot.slane %v555, 2
    %v557 = vadd.f32 %v555, %v556
    %v558 = vrot.slane %v557, 1
    %v559 = vadd.f32 %v557, %v558
    %v560 = vadd.f32 %v103, %v109
    %v561 = vadd.f32 %v560, %v115
    %v562 = vadd.f32 %v561, %v121
    %v563 = vadd.f32 %v562, %v127
    %v564 = vadd.f32 %v563, %v133
    %v565 = vsel %vm356, %v139, 0.0
    %v566 = vadd.f32 %v564, %v565
    %v567 = vrot.slane %v566, 4
    %v568 = vadd.f32 %v566, %v567
    %v569 = vrot.slane %v568, 2
    %v570 = vadd.f32 %v568, %v569
    %v571 = vrot.slane %v570, 1
    %v572 = vadd.f32 %v570, %v571
    %v573 = vadd.f32 %v104, %v110
    %v574 = vadd.f32 %v573, %v116
    %v575 = vadd.f32 %v574, %v122
    %v576 = vadd.f32 %v575, %v128
    %v577 = vadd.f32 %v576, %v134
    %v578 = vsel %vm356, %v140, 0.0
    %v579 = vadd.f32 %v577, %v578
    %v580 = vrot.slane %v579, 4
    %v581 = vadd.f32 %v579, %v580
    %v582 = vrot.slane %v581, 2
    %v583 = vadd.f32 %v581, %v582
    %v584 = vrot.slane %v583, 1
    %v585 = vadd.f32 %v583, %v584
    %v586 = vadd.f32 %v141, %v147
    %v587 = vadd.f32 %v586, %v153
    %v588 = vadd.f32 %v587, %v159
    %v589 = vadd.f32 %v588, %v165
    %v590 = vadd.f32 %v589, %v171
    %v591 = vsel %vm356, %v177, 0.0
    %v592 = vadd.f32 %v590, %v591
    %v593 = vrot.slane %v592, 4
    %v594 = vadd.f32 %v592, %v593
    %v595 = vrot.slane %v594, 2
    %v596 = vadd.f32 %v594, %v595
    %v597 = vrot.slane %v596, 1
    %v598 = vadd.f32 %v596, %v597
    %v599 = vadd.f32 %v142, %v148
    %v600 = vadd.f32 %v599, %v154
    %v601 = vadd.f32 %v600, %v160
    %v602 = vadd.f32 %v601, %v166
    %v603 = vadd.f32 %v602, %v172
    %v604 = vsel %vm356, %v178, 0.0
    %v605 = vadd.f32 %v603, %v604
    %v606 = vrot.slane %v605, 4
    %v607 = vadd.f32 %v605, %v606
    %v608 = vrot.slane %v607, 2
    %v609 = vadd.f32 %v607, %v608
    %v610 = vrot.slane %v609, 1
    %v611 = vadd.f32 %v609, %v610
    %v612 = vadd.f32 %v143, %v149
    %v613 = vadd.f32 %v612, %v155
    %v614 = vadd.f32 %v613, %v161
    %v615 = vadd.f32 %v614, %v167
    %v616 = vadd.f32 %v615, %v173
    %v617 = vsel %vm356, %v179, 0.0
    %v618 = vadd.f32 %v616, %v617
    %v619 = vrot.slane %v618, 4
    %v620 = vadd.f32 %v618, %v619
    %v621 = vrot.slane %v620, 2
    %v622 = vadd.f32 %v620, %v621
    %v623 = vrot.slane %v622, 1
    %v624 = vadd.f32 %v622, %v623
    %v625 = vadd.f32 %v144, %v150
    %v626 = vadd.f32 %v625, %v156
    %v627 = vadd.f32 %v626, %v162
    %v628 = vadd.f32 %v627, %v168
    %v629 = vadd.f32 %v628, %v174
    %v630 = vsel %vm356, %v180, 0.0
    %v631 = vadd.f32 %v629, %v630
    %v632 = vrot.slane %v631, 4
    %v633 = vadd.f32 %v631, %v632
    %v634 = vrot.slane %v633, 2
    %v635 = vadd.f32 %v633, %v634
    %v636 = vrot.slane %v635, 1
    %v637 = vadd.f32 %v635, %v636
    %v638 = vadd.f32 %v145, %v151
    %v639 = vadd.f32 %v638, %v157
    %v640 = vadd.f32 %v639, %v163
    %v641 = vadd.f32 %v640, %v169
    %v642 = vadd.f32 %v641, %v175
    %v643 = vsel %vm356, %v181, 0.0
    %v644 = vadd.f32 %v642, %v643
    %v645 = vrot.slane %v644, 4
    %v646 = vadd.f32 %v644, %v645
    %v647 = vrot.slane %v646, 2
    %v648 = vadd.f32 %v646, %v647
    %v649 = vrot.slane %v648, 1
    %v650 = vadd.f32 %v648, %v649
    %v651 = vadd.f32 %v146, %v152
    %v652 = vadd.f32 %v651, %v158
    %v653 = vadd.f32 %v652, %v164
    %v654 = vadd.f32 %v653, %v170
    %v655 = vadd.f32 %v654, %v176
    %v656 = vsel %vm356, %v182, 0.0
    %v657 = vadd.f32 %v655, %v656
    %v658 = vrot.slane %v657, 4
    %v659 = vadd.f32 %v657, %v658
    %v660 = vrot.slane %v659, 2
    %v661 = vadd.f32 %v659, %v660
    %v662 = vrot.slane %v661, 1
    %v663 = vadd.f32 %v661, %v662
    %v664 = vadd.f32 %v183, %v189
    %v665 = vadd.f32 %v664, %v195
    %v666 = vadd.f32 %v665, %v201
    %v667 = vadd.f32 %v666, %v207
    %v668 = vadd.f32 %v667, %v213
    %v669 = vsel %vm356, %v219, 0.0
    %v670 = vadd.f32 %v668, %v669
    %v671 = vrot.slane %v670, 4
    %v672 = vadd.f32 %v670, %v671
    %v673 = vrot.slane %v672, 2
    %v674 = vadd.f32 %v672, %v673
    %v675 = vrot.slane %v674, 1
    %v676 = vadd.f32 %v674, %v675
    %v677 = vadd.f32 %v184, %v190
    %v678 = vadd.f32 %v677, %v196
    %v679 = vadd.f32 %v678, %v202
    %v680 = vadd.f32 %v679, %v208
    %v681 = vadd.f32 %v680, %v214
    %v682 = vsel %vm356, %v220, 0.0
    %v683 = vadd.f32 %v681, %v682
    %v684 = vrot.slane %v683, 4
    %v685 = vadd.f32 %v683, %v684
    %v686 = vrot.slane %v685, 2
    %v687 = vadd.f32 %v685, %v686
    %v688 = vrot.slane %v687, 1
    %v689 = vadd.f32 %v687, %v688
    %v690 = vadd.f32 %v185, %v191
    %v691 = vadd.f32 %v690, %v197
    %v692 = vadd.f32 %v691, %v203
    %v693 = vadd.f32 %v692, %v209
    %v694 = vadd.f32 %v693, %v215
    %v695 = vsel %vm356, %v221, 0.0
    %v696 = vadd.f32 %v694, %v695
    %v697 = vrot.slane %v696, 4
    %v698 = vadd.f32 %v696, %v697
    %v699 = vrot.slane %v698, 2
    %v700 = vadd.f32 %v698, %v699
    %v701 = vrot.slane %v700, 1
    %v702 = vadd.f32 %v700, %v701
    %v703 = vadd.f32 %v186, %v192
    %v704 = vadd.f32 %v703, %v198
    %v705 = vadd.f32 %v704, %v204
    %v706 = vadd.f32 %v705, %v210
    %v707 = vadd.f32 %v706, %v216
    %v708 = vsel %vm356, %v222, 0.0
    %v709 = vadd.f32 %v707, %v708
    %v710 = vrot.slane %v709, 4
    %v711 = vadd.f32 %v709, %v710
    %v712 = vrot.slane %v711, 2
    %v713 = vadd.f32 %v711, %v712
    %v714 = vrot.slane %v713, 1
    %v715 = vadd.f32 %v713, %v714
    %v716 = vadd.f32 %v187, %v193
    %v717 = vadd.f32 %v716, %v199
    %v718 = vadd.f32 %v717, %v205
    %v719 = vadd.f32 %v718, %v211
    %v720 = vadd.f32 %v719, %v217
    %v721 = vsel %vm356, %v223, 0.0
    %v722 = vadd.f32 %v720, %v721
    %v723 = vrot.slane %v722, 4
    %v724 = vadd.f32 %v722, %v723
    %v725 = vrot.slane %v724, 2
    %v726 = vadd.f32 %v724, %v725
    %v727 = vrot.slane %v726, 1
    %v728 = vadd.f32 %v726, %v727
    %v729 = vadd.f32 %v188, %v194
    %v730 = vadd.f32 %v729, %v200
    %v731 = vadd.f32 %v730, %v206
    %v732 = vadd.f32 %v731, %v212
    %v733 = vadd.f32 %v732, %v218
    %v734 = vsel %vm356, %v224, 0.0
    %v735 = vadd.f32 %v733, %v734
    %v736 = vrot.slane %v735, 4
    %v737 = vadd.f32 %v735, %v736
    %v738 = vrot.slane %v737, 2
    %v739 = vadd.f32 %v737, %v738
    %v740 = vrot.slane %v739, 1
    %v741 = vadd.f32 %v739, %v740
    %v742 = vadd.f32 %v225, %v231
    %v743 = vadd.f32 %v742, %v237
    %v744 = vadd.f32 %v743, %v243
    %v745 = vadd.f32 %v744, %v249
    %v746 = vadd.f32 %v745, %v255
    %v747 = vsel %vm356, %v261, 0.0
    %v748 = vadd.f32 %v746, %v747
    %v749 = vrot.slane %v748, 4
    %v750 = vadd.f32 %v748, %v749
    %v751 = vrot.slane %v750, 2
    %v752 = vadd.f32 %v750, %v751
    %v753 = vrot.slane %v752, 1
    %v754 = vadd.f32 %v752, %v753
    %v755 = vadd.f32 %v226, %v232
    %v756 = vadd.f32 %v755, %v238
    %v757 = vadd.f32 %v756, %v244
    %v758 = vadd.f32 %v757, %v250
    %v759 = vadd.f32 %v758, %v256
    %v760 = vsel %vm356, %v262, 0.0
    %v761 = vadd.f32 %v759, %v760
    %v762 = vrot.slane %v761, 4
    %v763 = vadd.f32 %v761, %v762
    %v764 = vrot.slane %v763, 2
    %v765 = vadd.f32 %v763, %v764
    %v766 = vrot.slane %v765, 1
    %v767 = vadd.f32 %v765, %v766
    %v768 = vadd.f32 %v227, %v233
    %v769 = vadd.f32 %v768, %v239
    %v770 = vadd.f32 %v769, %v245
    %v771 = vadd.f32 %v770, %v251
    %v772 = vadd.f32 %v771, %v257
    %v773 = vsel %vm356, %v263, 0.0
    %v774 = vadd.f32 %v772, %v773
    %v775 = vrot.slane %v774, 4
    %v776 = vadd.f32 %v774, %v775
    %v777 = vrot.slane %v776, 2
    %v778 = vadd.f32 %v776, %v777
    %v779 = vrot.slane %v778, 1
    %v780 = vadd.f32 %v778, %v779
    %v781 = vadd.f32 %v228, %v234
    %v782 = vadd.f32 %v781, %v240
    %v783 = vadd.f32 %v782, %v246
    %v784 = vadd.f32 %v783, %v252
    %v785 = vadd.f32 %v784, %v258
    %v786 = vsel %vm356, %v264, 0.0
    %v787 = vadd.f32 %v785, %v786
    %v788 = vrot.slane %v787, 4
    %v789 = vadd.f32 %v787, %v788
    %v790 = vrot.slane %v789, 2
    %v791 = vadd.f32 %v789, %v790
    %v792 = vrot.slane %v791, 1
    %v793 = vadd.f32 %v791, %v792
    %v794 = vadd.f32 %v229, %v235
    %v795 = vadd.f32 %v794, %v241
    %v796 = vadd.f32 %v795, %v247
    %v797 = vadd.f32 %v796, %v253
    %v798 = vadd.f32 %v797, %v259
    %v799 = vsel %vm356, %v265, 0.0
    %v800 = vadd.f32 %v798, %v799
    %v801 = vrot.slane %v800, 4
    %v802 = vadd.f32 %v800, %v801
    %v803 = vrot.slane %v802, 2
    %v804 = vadd.f32 %v802, %v803
    %v805 = vrot.slane %v804, 1
    %v806 = vadd.f32 %v804, %v805
    %v807 = vadd.f32 %v230, %v236
    %v808 = vadd.f32 %v807, %v242
    %v809 = vadd.f32 %v808, %v248
    %v810 = vadd.f32 %v809, %v254
    %v811 = vadd.f32 %v810, %v260
    %v812 = vsel %vm356, %v266, 0.0
    %v813 = vadd.f32 %v811, %v812
    %v814 = vrot.slane %v813, 4
    %v815 = vadd.f32 %v813, %v814
    %v816 = vrot.slane %v815, 2
    %v817 = vadd.f32 %v815, %v816
    %v818 = vrot.slane %v817, 1
    %v819 = vadd.f32 %v817, %v818
    %v820 = vadd.f32 %v267, %v273
    %v821 = vadd.f32 %v820, %v279
    %v822 = vadd.f32 %v821, %v285
    %v823 = vadd.f32 %v822, %v291
    %v824 = vadd.f32 %v823, %v297
    %v825 = vsel %vm356, %v303, 0.0
    %v826 = vadd.f32 %v824, %v825
    %v827 = vrot.slane %v826, 4
    %v828 = vadd.f32 %v826, %v827
    %v829 = vrot.slane %v828, 2
    %v830 = vadd.f32 %v828, %v829
    %v831 = vrot.slane %v830, 1
    %v832 = vadd.f32 %v830, %v831
    %v833 = vadd.f32 %v268, %v274
    %v834 = vadd.f32 %v833, %v280
    %v835 = vadd.f32 %v834, %v286
    %v836 = vadd.f32 %v835, %v292
    %v837 = vadd.f32 %v836, %v298
    %v838 = vsel %vm356, %v304, 0.0
    %v839 = vadd.f32 %v837, %v838
    %v840 = vrot.slane %v839, 4
    %v841 = vadd.f32 %v839, %v840
    %v842 = vrot.slane %v841, 2
    %v843 = vadd.f32 %v841, %v842
    %v844 = vrot.slane %v843, 1
    %v845 = vadd.f32 %v843, %v844
    %v846 = vadd.f32 %v269, %v275
    %v847 = vadd.f32 %v846, %v281
    %v848 = vadd.f32 %v847, %v287
    %v849 = vadd.f32 %v848, %v293
    %v850 = vadd.f32 %v849, %v299
    %v851 = vsel %vm356, %v305, 0.0
    %v852 = vadd.f32 %v850, %v851
    %v853 = vrot.slane %v852, 4
    %v854 = vadd.f32 %v852, %v853
    %v855 = vrot.slane %v854, 2
    %v856 = vadd.f32 %v854, %v855
    %v857 = vrot.slane %v856, 1
    %v858 = vadd.f32 %v856, %v857
    %v859 = vadd.f32 %v270, %v276
    %v860 = vadd.f32 %v859, %v282
    %v861 = vadd.f32 %v860, %v288
    %v862 = vadd.f32 %v861, %v294
    %v863 = vadd.f32 %v862, %v300
    %v864 = vsel %vm356, %v306, 0.0
    %v865 = vadd.f32 %v863, %v864
    %v866 = vrot.slane %v865, 4
    %v867 = vadd.f32 %v865, %v866
    %v868 = vrot.slane %v867, 2
    %v869 = vadd.f32 %v867, %v868
    %v870 = vrot.slane %v869, 1
    %v871 = vadd.f32 %v869, %v870
    %v872 = vadd.f32 %v271, %v277
    %v873 = vadd.f32 %v872, %v283
    %v874 = vadd.f32 %v873, %v289
    %v875 = vadd.f32 %v874, %v295
    %v876 = vadd.f32 %v875, %v301
    %v877 = vsel %vm356, %v307, 0.0
    %v878 = vadd.f32 %v876, %v877
    %v879 = vrot.slane %v878, 4
    %v880 = vadd.f32 %v878, %v879
    %v881 = vrot.slane %v880, 2
    %v882 = vadd.f32 %v880, %v881
    %v883 = vrot.slane %v882, 1
    %v884 = vadd.f32 %v882, %v883
    %v885 = vadd.f32 %v272, %v278
    %v886 = vadd.f32 %v885, %v284
    %v887 = vadd.f32 %v886, %v290
    %v888 = vadd.f32 %v887, %v296
    %v889 = vadd.f32 %v888, %v302
    %v890 = vsel %vm356, %v308, 0.0
    %v891 = vadd.f32 %v889, %v890
    %v892 = vrot.slane %v891, 4
    %v893 = vadd.f32 %v891, %v892
    %v894 = vrot.slane %v893, 2
    %v895 = vadd.f32 %v893, %v894
    %v896 = vrot.slane %v895, 1
    %v897 = vadd.f32 %v895, %v896
    %v898 = vadd.f32 %v309, %v315
    %v899 = vadd.f32 %v898, %v321
    %v900 = vadd.f32 %v899, %v327
    %v901 = vadd.f32 %v900, %v333
    %v902 = vadd.f32 %v901, %v339
    %v903 = vsel %vm356, %v345, 0.0
    %v904 = vadd.f32 %v902, %v903
    %v905 = vrot.slane %v904, 4
    %v906 = vadd.f32 %v904, %v905
    %v907 = vrot.slane %v906, 2
    %v908 = vadd.f32 %v906, %v907
    %v909 = vrot.slane %v908, 1
    %v910 = vadd.f32 %v908, %v909
    %v911 = vadd.f32 %v310, %v316
    %v912 = vadd.f32 %v911, %v322
    %v913 = vadd.f32 %v912, %v328
    %v914 = vadd.f32 %v913, %v334
    %v915 = vadd.f32 %v914, %v340
    %v916 = vsel %vm356, %v346, 0.0
    %v917 = vadd.f32 %v915, %v916
    %v918 = vrot.slane %v917, 4
    %v919 = vadd.f32 %v917, %v918
    %v920 = vrot.slane %v919, 2
    %v921 = vadd.f32 %v919, %v920
    %v922 = vrot.slane %v921, 1
    %v923 = vadd.f32 %v921, %v922
    %v924 = vadd.f32 %v311, %v317
    %v925 = vadd.f32 %v924, %v323
    %v926 = vadd.f32 %v925, %v329
    %v927 = vadd.f32 %v926, %v335
    %v928 = vadd.f32 %v927, %v341
    %v929 = vsel %vm356, %v347, 0.0
    %v930 = vadd.f32 %v928, %v929
    %v931 = vrot.slane %v930, 4
    %v932 = vadd.f32 %v930, %v931
    %v933 = vrot.slane %v932, 2
    %v934 = vadd.f32 %v932, %v933
    %v935 = vrot.slane %v934, 1
    %v936 = vadd.f32 %v934, %v935
    %v937 = vadd.f32 %v312, %v318
    %v938 = vadd.f32 %v937, %v324
    %v939 = vadd.f32 %v938, %v330
    %v940 = vadd.f32 %v939, %v336
    %v941 = vadd.f32 %v940, %v342
    %v942 = vsel %vm356, %v348, 0.0
    %v943 = vadd.f32 %v941, %v942
    %v944 = vrot.slane %v943, 4
    %v945 = vadd.f32 %v943, %v944
    %v946 = vrot.slane %v945, 2
    %v947 = vadd.f32 %v945, %v946
    %v948 = vrot.slane %v947, 1
    %v949 = vadd.f32 %v947, %v948
    %v950 = vadd.f32 %v313, %v319
    %v951 = vadd.f32 %v950, %v325
    %v952 = vadd.f32 %v951, %v331
    %v953 = vadd.f32 %v952, %v337
    %v954 = vadd.f32 %v953, %v343
    %v955 = vsel %vm356, %v349, 0.0
    %v956 = vadd.f32 %v954, %v955
    %v957 = vrot.slane %v956, 4
    %v958 = vadd.f32 %v956, %v957
    %v959 = vrot.slane %v958, 2
    %v960 = vadd.f32 %v958, %v959
    %v961 = vrot.slane %v960, 1
    %v962 = vadd.f32 %v960, %v961
    %v963 = vadd.f32 %v314, %v320
    %v964 = vadd.f32 %v963, %v326
    %v965 = vadd.f32 %v964, %v332
    %v966 = vadd.f32 %v965, %v338
    %v967 = vadd.f32 %v966, %v344
    %v968 = vsel %vm356, %v350, 0.0
    %v969 = vadd.f32 %v967, %v968
    %v970 = vrot.slane %v969, 4
    %v971 = vadd.f32 %v969, %v970
    %v972 = vrot.slane %v971, 2
    %v973 = vadd.f32 %v971, %v972
    %v974 = vrot.slane %v973, 1
    %v975 = vadd.f32 %v973, %v974
    %v976 = vmul.f32 %v364, 0.020408163
    %v977 = vmul.f32 %v377, 0.020408163
    %v978 = vmul.f32 %v390, 0.020408163
    %v979 = vmul.f32 %v403, 0.020408163
    %v980 = vmul.f32 %v416, 0.020408163
    %v981 = vmul.f32 %v429, 0.020408163
    %v982 = vmul.f32 %v442, 0.020408163
    %v983 = vmul.f32 %v455, 0.020408163
    %v984 = vmul.f32 %v468, 0.020408163
    %v985 = vmul.f32 %v481, 0.020408163
    %v986 = vmul.f32 %v494, 0.020408163
    %v987 = vmul.f32 %v507, 0.020408163
    %v988 = vmul.f32 %v520, 0.020408163
    %v989 = vmul.f32 %v533, 0.020408163
    %v990 = vmul.f32 %v546, 0.020408163
    %v991 = vmul.f32 %v559, 0.020408163
    %v992 = vmul.f32 %v572, 0.020408163
    %v993 = vmul.f32 %v585, 0.020408163
    %v994 = vmul.f32 %v598, 0.020408163
    %v995 = vmul.f32 %v611, 0.020408163
    %v996 = vmul.f32 %v624, 0.020408163
    %v997 = vmul.f32 %v637, 0.020408163
    %v998 = vmul.f32 %v650, 0.020408163
    %v999 = vmul.f32 %v663, 0.020408163
    %v1000 = vmul.f32 %v676, 0.020408163
    %v1001 = vmul.f32 %v689, 0.020408163
    %v1002 = vmul.f32 %v702, 0.020408163
    %v1003 = vmul.f32 %v715, 0.020408163
    %v1004 = vmul.f32 %v728, 0.020408163
    %v1005 = vmul.f32 %v741, 0.020408163
    %v1006 = vmul.f32 %v754, 0.020408163
    %v1007 = vmul.f32 %v767, 0.020408163
    %v1008 = vmul.f32 %v780, 0.020408163
    %v1009 = vmul.f32 %v793, 0.020408163
    %v1010 = vmul.f32 %v806, 0.020408163
    %v1011 = vmul.f32 %v819, 0.020408163
    %v1012 = vmul.f32 %v832, 0.020408163
    %v1013 = vmul.f32 %v845, 0.020408163
    %v1014 = vmul.f32 %v858, 0.020408163
    %v1015 = vmul.f32 %v871, 0.020408163
    %v1016 = vmul.f32 %v884, 0.020408163
    %v1017 = vmul.f32 %v897, 0.020408163
    %v1018 = vmul.f32 %v910, 0.020408163
    %v1019 = vmul.f32 %v923, 0.020408163
    %v1020 = vmul.f32 %v936, 0.020408163
    %v1021 = vmul.f32 %v949, 0.020408163
    %v1022 = vmul.f32 %v962, 0.020408163
    %v1023 = vmul.f32 %v975, 0.020408163
    %v1024 = vld [vmem:[%s1] sm:$0xff]
    %v1025 = vld [vmem:[%s1 + $0x8] sm:$0xff]
    %v1026 = vld [vmem:[%s1 + $0x10] sm:$0xff]
    %v1027 = vld [vmem:[%s1 + $0x18] sm:$0xff]
    %v1028 = vld [vmem:[%s1 + $0x20] sm:$0xff]
    %v1029 = vld [vmem:[%s1 + $0x28] sm:$0xff]
    %v1030 = vld [vmem:[%s1 + $0x30] sm:$0xff]
    %v1031 = vld [vmem:[%s1 + $0x38] sm:$0xff]
    %v1032 = vld [vmem:[%s1 + $0x40] sm:$0xff]
    %v1033 = vld [vmem:[%s1 + $0x48] sm:$0xff]
    %v1034 = vld [vmem:[%s1 + $0x50] sm:$0xff]
    %v1035 = vld [vmem:[%s1 + $0x58] sm:$0xff]
    %v1036 = vld [vmem:[%s1 + $0x60] sm:$0xff]
    %v1037 = vld [vmem:[%s1 + $0x68] sm:$0xff]
    %v1038 = vld [vmem:[%s1 + $0x70] sm:$0xff]
    %v1039 = vld [vmem:[%s1 + $0x78] sm:$0xff]
    %v1040 = vld [vmem:[%s1 + $0x80] sm:$0xff]
    %v1041 = vld [vmem:[%s1 + $0x88] sm:$0xff]
    %v1042 = vld [vmem:[%s1 + $0x90] sm:$0xff]
    %v1043 = vld [vmem:[%s1 + $0x98] sm:$0xff]
    %v1044 = vld [vmem:[%s1 + $0xa0] sm:$0xff]
    %v1045 = vld [vmem:[%s1 + $0xa8] sm:$0xff]
    %v1046 = vld [vmem:[%s1 + $0xb0] sm:$0xff]
    %v1047 = vld [vmem:[%s1 + $0xb8] sm:$0xff]
    %v1048 = vld [vmem:[%s1 + $0xc0] sm:$0xff]
    %v1049 = vld [vmem:[%s1 + $0xc8] sm:$0xff]
    %v1050 = vld [vmem:[%s1 + $0xd0] sm:$0xff]
    %v1051 = vld [vmem:[%s1 + $0xd8] sm:$0xff]
    %v1052 = vld [vmem:[%s1 + $0xe0] sm:$0xff]
    %v1053 = vld [vmem:[%s1 + $0xe8] sm:$0xff]
    %v1054 = vld [vmem:[%s1 + $0xf0] sm:$0xff]
    %v1055 = vld [vmem:[%s1 + $0xf8] sm:$0xff]
    %v1056 = vld [vmem:[%s1 + $0x100] sm:$0xff]
    %v1057 = vld [vmem:[%s1 + $0x108] sm:$0xff]
    %v1058 = vld [vmem:[%s1 + $0x110] sm:$0xff]
    %v1059 = vld [vmem:[%s1 + $0x118] sm:$0xff]
    %v1060 = vld [vmem:[%s1 + $0x120] sm:$0xff]
    %v1061 = vld [vmem:[%s1 + $0x128] sm:$0xff]
    %v1062 = vld [vmem:[%s1 + $0x130] sm:$0xff]
    %v1063 = vld [vmem:[%s1 + $0x138] sm:$0xff]
    %v1064 = vld [vmem:[%s1 + $0x140] sm:$0xff]
    %v1065 = vld [vmem:[%s1 + $0x148] sm:$0xff]
    %v1066 = vld [vmem:[%s1 + $0x150] sm:$0xff]
    %v1067 = vld [vmem:[%s1 + $0x158] sm:$0xff]
    %v1068 = vld [vmem:[%s1 + $0x160] sm:$0xff]
    %v1069 = vld [vmem:[%s1 + $0x168] sm:$0xff]
    %v1070 = vld [vmem:[%s1 + $0x170] sm:$0xff]
    %v1071 = vld [vmem:[%s1 + $0x178] sm:$0xff]
    %v1072 = vld [vmem:[%s1 + $0x180] sm:$0xff]
    %v1073 = vld [vmem:[%s1 + $0x188] sm:$0xff]
    %v1074 = vld [vmem:[%s1 + $0x190] sm:$0xff]
    %v1075 = vld [vmem:[%s1 + $0x198] sm:$0xff]
    %v1076 = vld [vmem:[%s1 + $0x1a0] sm:$0xff]
    %v1077 = vld [vmem:[%s1 + $0x1a8] sm:$0xff]
    %v1078 = vld [vmem:[%s1 + $0x1b0] sm:$0xff]
    %v1079 = vld [vmem:[%s1 + $0x1b8] sm:$0xff]
    %v1080 = vld [vmem:[%s1 + $0x1c0] sm:$0xff]
    %v1081 = vld [vmem:[%s1 + $0x1c8] sm:$0xff]
    %v1082 = vld [vmem:[%s1 + $0x1d0] sm:$0xff]
    %v1083 = vld [vmem:[%s1 + $0x1d8] sm:$0xff]
    %v1084 = vld [vmem:[%s1 + $0x1e0] sm:$0xff]
    %v1085 = vld [vmem:[%s1 + $0x1e8] sm:$0xff]
    %v1086 = vld [vmem:[%s1 + $0x1f0] sm:$0xff]
    %v1087 = vld [vmem:[%s1 + $0x1f8] sm:$0xff]
    %v1088 = vld [vmem:[%s1 + $0x200] sm:$0xff]
    %v1089 = vld [vmem:[%s1 + $0x208] sm:$0xff]
    %v1090 = vld [vmem:[%s1 + $0x210] sm:$0xff]
    %v1091 = vld [vmem:[%s1 + $0x218] sm:$0xff]
    %v1092 = vld [vmem:[%s1 + $0x220] sm:$0xff]
    %v1093 = vld [vmem:[%s1 + $0x228] sm:$0xff]
    %v1094 = vld [vmem:[%s1 + $0x230] sm:$0xff]
    %v1095 = vld [vmem:[%s1 + $0x238] sm:$0xff]
    %v1096 = vld [vmem:[%s1 + $0x240] sm:$0xff]
    %v1097 = vld [vmem:[%s1 + $0x248] sm:$0xff]
    %v1098 = vld [vmem:[%s1 + $0x250] sm:$0xff]
    %v1099 = vld [vmem:[%s1 + $0x258] sm:$0xff]
    %v1100 = vld [vmem:[%s1 + $0x260] sm:$0xff]
    %v1101 = vld [vmem:[%s1 + $0x268] sm:$0xff]
    %v1102 = vld [vmem:[%s1 + $0x270] sm:$0xff]
    %v1103 = vld [vmem:[%s1 + $0x278] sm:$0xff]
    %v1104 = vld [vmem:[%s1 + $0x280] sm:$0xff]
    %v1105 = vld [vmem:[%s1 + $0x288] sm:$0xff]
    %v1106 = vld [vmem:[%s1 + $0x290] sm:$0xff]
    %v1107 = vld [vmem:[%s1 + $0x298] sm:$0xff]
    %v1108 = vld [vmem:[%s1 + $0x2a0] sm:$0xff]
    %v1109 = vld [vmem:[%s1 + $0x2a8] sm:$0xff]
    %v1110 = vld [vmem:[%s1 + $0x2b0] sm:$0xff]
    %v1111 = vld [vmem:[%s1 + $0x2b8] sm:$0xff]
    %v1112 = vld [vmem:[%s1 + $0x2c0] sm:$0xff]
    %v1113 = vld [vmem:[%s1 + $0x2c8] sm:$0xff]
    %v1114 = vld [vmem:[%s1 + $0x2d0] sm:$0xff]
    %v1115 = vld [vmem:[%s1 + $0x2d8] sm:$0xff]
    %v1116 = vld [vmem:[%s1 + $0x2e0] sm:$0xff]
    %v1117 = vld [vmem:[%s1 + $0x2e8] sm:$0xff]
    %v1118 = vld [vmem:[%s1 + $0x2f0] sm:$0xff]
    %v1119 = vld [vmem:[%s1 + $0x2f8] sm:$0xff]
    %v1120 = vld [vmem:[%s2] sm:$0x1]
    %v1122 = vperm.slane %v1120, 0
    %vm1172 = vcmask 1041409
    %v1173 = vsel %vm1172, %v982, %v976
    %vm1174 = vcmask 1042434
    %v1175 = vsel %vm1174, %v988, %v1173
    %vm1176 = vcmask 1043459
    %v1177 = vsel %vm1176, %v994, %v1175
    %vm1178 = vcmask 1044484
    %v1179 = vsel %vm1178, %v1000, %v1177
    %vm1180 = vcmask 1045509
    %v1181 = vsel %vm1180, %v1006, %v1179
    %vm1182 = vcmask 1046534
    %v1183 = vsel %vm1182, %v1012, %v1181
    %vm1184 = vcmask 1047559
    %v1185 = vsel %vm1184, %v1018, %v1183
    %v1186 = vsel %vm1172, %v983, %v977
    %v1187 = vsel %vm1174, %v989, %v1186
    %v1188 = vsel %vm1176, %v995, %v1187
    %v1189 = vsel %vm1178, %v1001, %v1188
    %v1190 = vsel %vm1180, %v1007, %v1189
    %v1191 = vsel %vm1182, %v1013, %v1190
    %v1192 = vsel %vm1184, %v1019, %v1191
    %v1193 = vsel %vm1172, %v984, %v978
    %v1194 = vsel %vm1174, %v990, %v1193
    %v1195 = vsel %vm1176, %v996, %v1194
    %v1196 = vsel %vm1178, %v1002, %v1195
    %v1197 = vsel %vm1180, %v1008, %v1196
    %v1198 = vsel %vm1182, %v1014, %v1197
    %v1199 = vsel %vm1184, %v1020, %v1198
    %v1200 = vsel %vm1172, %v985, %v979
    %v1201 = vsel %vm1174, %v991, %v1200
    %v1202 = vsel %vm1176, %v997, %v1201
    %v1203 = vsel %vm1178, %v1003, %v1202
    %v1204 = vsel %vm1180, %v1009, %v1203
    %v1205 = vsel %vm1182, %v1015, %v1204
    %v1206 = vsel %vm1184, %v1021, %v1205
    %v1207 = vsel %vm1172, %v986, %v980
    %v1208 = vsel %vm1174, %v992, %v1207
    %v1209 = vsel %vm1176, %v998, %v1208
    %v1210 = vsel %vm1178, %v1004, %v1209
    %v1211 = vsel %vm1180, %v1010, %v1210
    %v1212 = vsel %vm1182, %v1016, %v1211
    %v1213 = vsel %vm1184, %v1022, %v1212
    %v1214 = vsel %vm1172, %v987, %v981
    %v1215 = vsel %vm1174, %v993, %v1214
    %v1216 = vsel %vm1176, %v999, %v1215
    %v1217 = vsel %vm1178, %v1005, %v1216
    %v1218 = vsel %vm1180, %v1011, %v1217
    %v1219 = vsel %vm1182, %v1017, %v1218
    %v1220 = vsel %vm1184, %v1023, %v1219
    %1227 = vmatpush.msra.mxu0 %v1039
    %1228 = vmatpush.msra.mxu0 %v1038
    %1229 = vmatpush.msra.mxu0 %v1037
    %1230 = vmatpush.msra.mxu0 %v1036
    %1231 = vmatpush.msra.mxu0 %v1035
    %1232 = vmatpush.msra.mxu0 %v1034
    %1233 = vmatpush.msra.mxu0 %v1033
    %1234 = vmatpush.msra.mxu0 %v1032
    %1235 = vmatpush.msra.mxu0 %v1031
    %1236 = vmatpush.msra.mxu0 %v1030
    %1237 = vmatpush.msra.mxu0 %v1029
    %1238 = vmatpush.msra.mxu0 %v1028
    %1239 = vmatpush.msra.mxu0 %v1027
    %1240 = vmatpush.msra.mxu0 %v1026
    %1241 = vmatpush.msra.mxu0 %v1025
    %1242 = vmatpush.msra.mxu0 %v1024
    %1243 = vmatmul.f32.gmra.mxu0 %v1185
    %v1244 = vpop.f32.mrf.mxu0
    %v1245 = vadd.f32 %v1122, %v1244
    %1246 = vdwg.mxu0
    %1247 = vmatpush.msra.mxu0 %v1055
    %1248 = vmatpush.msra.mxu0 %v1054
    %1249 = vmatpush.msra.mxu0 %v1053
    %1250 = vmatpush.msra.mxu0 %v1052
    %1251 = vmatpush.msra.mxu0 %v1051
    %1252 = vmatpush.msra.mxu0 %v1050
    %1253 = vmatpush.msra.mxu0 %v1049
    %1254 = vmatpush.msra.mxu0 %v1048
    %1255 = vmatpush.msra.mxu0 %v1047
    %1256 = vmatpush.msra.mxu0 %v1046
    %1257 = vmatpush.msra.mxu0 %v1045
    %1258 = vmatpush.msra.mxu0 %v1044
    %1259 = vmatpush.msra.mxu0 %v1043
    %1260 = vmatpush.msra.mxu0 %v1042
    %1261 = vmatpush.msra.mxu0 %v1041
    %1262 = vmatpush.msra.mxu0 %v1040
    %1263 = vmatmul.f32.gmra.mxu0 %v1192
    %v1264 = vpop.f32.mrf.mxu0
    %v1265 = vadd.f32 %v1245, %v1264
    %1266 = vdwg.mxu0
    %1267 = vmatpush.msra.mxu0 %v1071
    %1268 = vmatpush.msra.mxu0 %v1070
    %1269 = vmatpush.msra.mxu0 %v1069
    %1270 = vmatpush.msra.mxu0 %v1068
    %1271 = vmatpush.msra.mxu0 %v1067
    %1272 = vmatpush.msra.mxu0 %v1066
    %1273 = vmatpush.msra.mxu0 %v1065
    %1274 = vmatpush.msra.mxu0 %v1064
    %1275 = vmatpush.msra.mxu0 %v1063
    %1276 = vmatpush.msra.mxu0 %v1062
    %1277 = vmatpush.msra.mxu0 %v1061
    %1278 = vmatpush.msra.mxu0 %v1060
    %1279 = vmatpush.msra.mxu0 %v1059
    %1280 = vmatpush.msra.mxu0 %v1058
    %1281 = vmatpush.msra.mxu0 %v1057
    %1282 = vmatpush.msra.mxu0 %v1056
    %1283 = vmatmul.f32.gmra.mxu0 %v1199
    %v1284 = vpop.f32.mrf.mxu0
    %v1285 = vadd.f32 %v1265, %v1284
    %1286 = vdwg.mxu0
    %1287 = vmatpush.msra.mxu0 %v1087
    %1288 = vmatpush.msra.mxu0 %v1086
    %1289 = vmatpush.msra.mxu0 %v1085
    %1290 = vmatpush.msra.mxu0 %v1084
    %1291 = vmatpush.msra.mxu0 %v1083
    %1292 = vmatpush.msra.mxu0 %v1082
    %1293 = vmatpush.msra.mxu0 %v1081
    %1294 = vmatpush.msra.mxu0 %v1080
    %1295 = vmatpush.msra.mxu0 %v1079
    %1296 = vmatpush.msra.mxu0 %v1078
    %1297 = vmatpush.msra.mxu0 %v1077
    %1298 = vmatpush.msra.mxu0 %v1076
    %1299 = vmatpush.msra.mxu0 %v1075
    %1300 = vmatpush.msra.mxu0 %v1074
    %1301 = vmatpush.msra.mxu0 %v1073
    %1302 = vmatpush.msra.mxu0 %v1072
    %1303 = vmatmul.f32.gmra.mxu0 %v1206
    %v1304 = vpop.f32.mrf.mxu0
    %v1305 = vadd.f32 %v1285, %v1304
    %1306 = vdwg.mxu0
    %1307 = vmatpush.msra.mxu0 %v1103
    %1308 = vmatpush.msra.mxu0 %v1102
    %1309 = vmatpush.msra.mxu0 %v1101
    %1310 = vmatpush.msra.mxu0 %v1100
    %1311 = vmatpush.msra.mxu0 %v1099
    %1312 = vmatpush.msra.mxu0 %v1098
    %1313 = vmatpush.msra.mxu0 %v1097
    %1314 = vmatpush.msra.mxu0 %v1096
    %1315 = vmatpush.msra.mxu0 %v1095
    %1316 = vmatpush.msra.mxu0 %v1094
    %1317 = vmatpush.msra.mxu0 %v1093
    %1318 = vmatpush.msra.mxu0 %v1092
    %1319 = vmatpush.msra.mxu0 %v1091
    %1320 = vmatpush.msra.mxu0 %v1090
    %1321 = vmatpush.msra.mxu0 %v1089
    %1322 = vmatpush.msra.mxu0 %v1088
    %1323 = vmatmul.f32.gmra.mxu0 %v1213
    %v1324 = vpop.f32.mrf.mxu0
    %v1325 = vadd.f32 %v1305, %v1324
    %1326 = vdwg.mxu0
    %1327 = vmatpush.msra.mxu0 %v1119
    %1328 = vmatpush.msra.mxu0 %v1118
    %1329 = vmatpush.msra.mxu0 %v1117
    %1330 = vmatpush.msra.mxu0 %v1116
    %1331 = vmatpush.msra.mxu0 %v1115
    %1332 = vmatpush.msra.mxu0 %v1114
    %1333 = vmatpush.msra.mxu0 %v1113
    %1334 = vmatpush.msra.mxu0 %v1112
    %1335 = vmatpush.msra.mxu0 %v1111
    %1336 = vmatpush.msra.mxu0 %v1110
    %1337 = vmatpush.msra.mxu0 %v1109
    %1338 = vmatpush.msra.mxu0 %v1108
    %1339 = vmatpush.msra.mxu0 %v1107
    %1340 = vmatpush.msra.mxu0 %v1106
    %1341 = vmatpush.msra.mxu0 %v1105
    %1342 = vmatpush.msra.mxu0 %v1104
    %1343 = vmatmul.f32.gmra.mxu0 %v1220
    %v1344 = vpop.f32.mrf.mxu0
    %v1345 = vadd.f32 %v1325, %v1344
    %1346 = vdwg.mxu0
    %1347 = vst [vmem:[#allocation2] sm:$0xff] %v1345
    // Predicated region
    $region14: #{tpu_custom_call.1} parent=1 // pred_check
      _
    $region15: #{tpu_custom_call.1} parent=1 // pred_check_branch
      %1349 = sbr.rel (0) target = $region17
    $region16: #{tpu_custom_call.1} parent=1 // pred_region
      %1351 = vsyncadd [#allocation3], 0
      %s1353 = sshll.u32 [#allocation2], 4
      %s1354 = int_to_ptr.vmem [resolvable:$true] %s1353
      %s1355 = sshll.u32 %s3, 4
      %s1356 = int_to_ptr.hbm [resolvable:$true] %s1355
      %1358 = dma.vmem_to_hbm [thread:$0]  %s1354, 128, %s1356, [#allocation3]
    $region17: #{tpu_custom_call.1} parent=1 // pred_fallthru
      _
    // Predicated region
    $region18: #{tpu_custom_call.1} parent=1 // pred_check
      _
    $region19: #{tpu_custom_call.1} parent=1 // pred_check_branch
      %1360 = sbr.rel (0) target = $region21
    $region20: #{tpu_custom_call.1} parent=1 // pred_region
      %1362 = dma.done [#allocation3], 128
    $region21: #{tpu_custom_call.1} parent=1 // pred_fallthru
      _
    %1363 = vsyncpa [#allocation3], 1

</llo_original>
